<compile_context>
chip_gen: v7x
topology: tpu7x:2x2x1
jax: 0.10.0
libtpu: 0.0.40
codegen_flags: <defaults>
</compile_context>

<pallas_src>
import jax
import jax.numpy as jnp
from jax.experimental import pallas as pl
from jax.experimental.pallas import tpu as pltpu

HIDDEN = 64      # model hidden size (PyTorch spec)
H_PAD = 128      # hidden padded to a full lane width
HEAD_PAD = 128   # fused actor|critic head weight padded to a full lane width


def _round_up(n, m):
    return (n + m - 1) // m * m


def _ppo_kernel(x_ref, w1_ref, b1_ref, w2_ref, b2_ref, wh_ref, bh_ref,
                actor_ref, critic_ref):
    w1 = w1_ref[...]
    cdt = w1.dtype                       # compute dtype (f32 or bf16)
    x = x_ref[...].astype(cdt)

    # fc1 + tanh  (f32 accumulation on the MXU, tanh in f32)
    h1 = jnp.tanh(
        jnp.dot(x, w1, preferred_element_type=jnp.float32) + b1_ref[...]
    )
    # fc2 + tanh
    h2 = jnp.tanh(
        jnp.dot(h1.astype(cdt), w2_ref[...],
                preferred_element_type=jnp.float32) + b2_ref[...]
    )
    # fused actor|critic head: one lane-dense 128-wide MXU matmul, then only
    # the real (act_dim + 1) columns are stored to HBM.
    head = (
        jnp.dot(h2.astype(cdt), wh_ref[...],
                preferred_element_type=jnp.float32) + bh_ref[...]
    )
    na = actor_ref.shape[-1]
    actor_ref[...] = head[:, :na].astype(actor_ref.dtype)
    critic_ref[...] = head[:, na:na + 1].astype(critic_ref.dtype)


def prepare_params(p, *, compute_dtype=jnp.float32):
    """One-time fusion + lane padding of the raw (in, out) weights.

    Returns:
      w1: (obs_dim, 128), b1: (1, 128)
      w2: (128, 128),     b2: (1, 128)
      wh: (128, 128) = [wa | wc | 0-pad],  bh: (1, 128)
    Weights are cast to `compute_dtype` (f32 default, bf16 for v5e/v6e MXU
    throughput); biases stay f32 (added after the f32-accumulated dot).
    """
    hidden = p["w1"].shape[1]
    act_dim = p["wa"].shape[1]
    assert hidden <= H_PAD, "hidden must fit in H_PAD lanes"
    assert act_dim + 1 <= HEAD_PAD, "act_dim + 1 must fit in HEAD_PAD lanes"

    def pad_cols(a, n):
        return jnp.pad(a, ((0, 0), (0, n - a.shape[1])))

    def pad_rows(a, n):
        return jnp.pad(a, ((0, n - a.shape[0]), (0, 0)))

    w1 = pad_cols(p["w1"], H_PAD).astype(compute_dtype)
    b1 = pad_cols(p["b1"], H_PAD).astype(jnp.float32)
    w2 = pad_cols(pad_rows(p["w2"], H_PAD), H_PAD).astype(compute_dtype)
    b2 = pad_cols(p["b2"], H_PAD).astype(jnp.float32)
    w_head = jnp.concatenate([p["wa"], p["wc"]], axis=1)   # (hidden, act_dim+1)
    b_head = jnp.concatenate([p["ba"], p["bc"]], axis=1)   # (1, act_dim+1)
    wh = pad_cols(pad_rows(w_head, H_PAD), HEAD_PAD).astype(compute_dtype)
    bh = pad_cols(b_head, HEAD_PAD).astype(jnp.float32)
    return dict(w1=w1, b1=b1, w2=w2, b2=b2, wh=wh, bh=bh)


def ppo_forward(x, prepped, act_dim, *, block_b=4096):
    """PPONetwork forward pass.

    x: (B, obs_dim) float32 (cast to the prepared weights' dtype for the DMA)
    prepped: output of prepare_params()
    returns: (actor_logits (B, act_dim), value (B, 1)), both float32
    """
    B, obs_dim = x.shape
    compute_dtype = prepped["w1"].dtype
    if x.dtype != compute_dtype:
        x = x.astype(compute_dtype)          # halves the x DMA when bf16

    # Batch tiling: large tiles amortize the ~0.35us/step grid overhead, but
    # cap at ceil(B/2) (multiple of 8) so the grid length is >= 2 and both
    # v7x TensorCores get work.  Weights stay VMEM-resident via index 0.
    block_b = max(8, _round_up(block_b, 8))
    tb = min(block_b, max(8, _round_up(-(-B // 2), 8)))
    grid = (pl.cdiv(B, tb),)

    itemsize = jnp.dtype(compute_dtype).itemsize
    weight_bytes = sum(int(prepped[k].size) * int(prepped[k].dtype.itemsize)
                       for k in ("w1", "b1", "w2", "b2", "wh", "bh"))
    cost = pl.CostEstimate(
        flops=2 * B * (obs_dim * H_PAD + H_PAD * H_PAD + H_PAD * HEAD_PAD),
        transcendentals=2 * B * H_PAD,
        bytes_accessed=B * obs_dim * itemsize + weight_bytes
        + B * (act_dim + 1) * 4,
    )

    actor, critic = pl.pallas_call(
        _ppo_kernel,
        out_shape=(
            jax.ShapeDtypeStruct((B, act_dim), jnp.float32),
            jax.ShapeDtypeStruct((B, 1), jnp.float32),
        ),
        grid=grid,
        in_specs=[
            pl.BlockSpec((tb, obs_dim), lambda i: (i, 0)),       # x: tiled over B
            pl.BlockSpec((obs_dim, H_PAD), lambda i: (0, 0)),    # w1: resident
            pl.BlockSpec((1, H_PAD), lambda i: (0, 0)),          # b1
            pl.BlockSpec((H_PAD, H_PAD), lambda i: (0, 0)),      # w2
            pl.BlockSpec((1, H_PAD), lambda i: (0, 0)),          # b2
            pl.BlockSpec((H_PAD, HEAD_PAD), lambda i: (0, 0)),   # fused head W
            pl.BlockSpec((1, HEAD_PAD), lambda i: (0, 0)),       # fused head b
        ],
        out_specs=(
            pl.BlockSpec((tb, act_dim), lambda i: (i, 0)),       # actor (narrow)
            pl.BlockSpec((tb, 1), lambda i: (i, 0)),             # critic (narrow)
        ),
        compiler_params=pltpu.CompilerParams(
            dimension_semantics=("parallel",)),
        cost_estimate=cost,
    )(x, prepped["w1"], prepped["b1"], prepped["w2"], prepped["b2"],
      prepped["wh"], prepped["bh"])

    return actor, critic


def init_ppo_params(key, obs_dim, act_dim, hidden=HIDDEN):
    """PyTorch nn.Linear default init: U(-1/sqrt(fan_in), 1/sqrt(fan_in)).
    Weights stored transposed relative to PyTorch: (in, out)."""
    def linear(k, fan_in, fan_out):
        kw, kb = jax.random.split(k)
        bound = 1.0 / jnp.sqrt(float(fan_in))
        w = jax.random.uniform(kw, (fan_in, fan_out), jnp.float32, -bound, bound)
        b = jax.random.uniform(kb, (1, fan_out), jnp.float32, -bound, bound)
        return w, b

    k1, k2, k3, k4 = jax.random.split(key, 4)
    w1, b1 = linear(k1, obs_dim, hidden)
    w2, b2 = linear(k2, hidden, hidden)
    wa, ba = linear(k3, hidden, act_dim)
    wc, bc = linear(k4, hidden, 1)
    return dict(w1=w1, b1=b1, w2=w2, b2=b2, wa=wa, ba=ba, wc=wc, bc=bc)


def ppo_forward_ref(x, p):
    """Pure-JAX reference for correctness checking (unfused, unpadded)."""
    h1 = jnp.tanh(x @ p["w1"] + p["b1"])
    h2 = jnp.tanh(h1 @ p["w2"] + p["b2"])
    return h2 @ p["wa"] + p["ba"], h2 @ p["wc"] + p["bc"]


if __name__ == "__main__":
    key = jax.random.PRNGKey(0)
    k_params, k_x1, k_x2 = jax.random.split(key, 3)

    obs_dim, act_dim = 16, 4
    params = init_ppo_params(k_params, obs_dim, act_dim)
    prepped = prepare_params(params)

    # Small batch (single grid step).
    B = 8
    x = jax.random.normal(k_x1, (B, obs_dim), jnp.float32)
    actor_out, critic_out = ppo_forward(x, prepped, act_dim)
    jax.block_until_ready((actor_out, critic_out))

    ref_actor, ref_critic = ppo_forward_ref(x, params)
    assert actor_out.shape == (B, act_dim)
    assert critic_out.shape == (B, 1)
    assert jnp.allclose(actor_out, ref_actor, atol=1e-4, rtol=1e-4)
    assert jnp.allclose(critic_out, ref_critic, atol=1e-4, rtol=1e-4)

    # Larger batch exercising the multi-step grid with a partial last block
    # (tb = 104, grid = 2, last block covers rows 104..199 of 200).
    B2 = 200
    x2 = jax.random.normal(k_x2, (B2, obs_dim), jnp.float32)
    actor2, critic2 = ppo_forward(x2, prepped, act_dim)
    jax.block_until_ready((actor2, critic2))

    ref_actor2, ref_critic2 = ppo_forward_ref(x2, params)
    assert actor2.shape == (B2, act_dim)
    assert critic2.shape == (B2, 1)
    assert jnp.allclose(actor2, ref_actor2, atol=1e-4, rtol=1e-4)
    assert jnp.allclose(critic2, ref_critic2, atol=1e-4, rtol=1e-4)

    # Optional bf16 operand path (v5e/v6e MXU win); f32 accumulation, looser tol.
    prepped_bf16 = prepare_params(params, compute_dtype=jnp.bfloat16)
    actor3, critic3 = ppo_forward(x2, prepped_bf16, act_dim)
    jax.block_until_ready((actor3, critic3))
    assert jnp.allclose(actor3, ref_actor2, atol=5e-2, rtol=5e-2)
    assert jnp.allclose(critic3, ref_critic2, atol=5e-2, rtol=5e-2)

    print("KERNEL_OK")
</pallas_src>

<mosaic_0001>
module attributes {stable_mosaic.version = 11 : i64} {
  func.func @_ppo_kernel(%arg0: i32, %arg1: memref<8x16xf32, #tpu.memory_space<vmem>>, %arg2: memref<16x128xf32, #tpu.memory_space<vmem>>, %arg3: memref<1x128xf32, #tpu.memory_space<vmem>>, %arg4: memref<128x128xf32, #tpu.memory_space<vmem>>, %arg5: memref<1x128xf32, #tpu.memory_space<vmem>>, %arg6: memref<128x128xf32, #tpu.memory_space<vmem>>, %arg7: memref<1x128xf32, #tpu.memory_space<vmem>>, %arg8: memref<8x4xf32, #tpu.memory_space<vmem>>, %arg9: memref<8x1xf32, #tpu.memory_space<vmem>>) attributes {dimension_semantics = [#tpu.dimension_semantics<parallel>], iteration_bounds = array<i64: 1>, scalar_prefetch = 0 : i64, scratch_operands = 0 : i64, tpu.core_type = #tpu.core_type<tc>, window_params = [{transform_indices = @transform_0, window_bounds = array<i64: 8, 16>}, {pipeline_mode = #tpu.pipeline_mode<synchronous>, transform_indices = @transform_1, window_bounds = array<i64: 16, 128>}, {pipeline_mode = #tpu.pipeline_mode<synchronous>, transform_indices = @transform_2, window_bounds = array<i64: 1, 128>}, {pipeline_mode = #tpu.pipeline_mode<synchronous>, transform_indices = @transform_3, window_bounds = array<i64: 128, 128>}, {pipeline_mode = #tpu.pipeline_mode<synchronous>, transform_indices = @transform_4, window_bounds = array<i64: 1, 128>}, {pipeline_mode = #tpu.pipeline_mode<synchronous>, transform_indices = @transform_5, window_bounds = array<i64: 128, 128>}, {pipeline_mode = #tpu.pipeline_mode<synchronous>, transform_indices = @transform_6, window_bounds = array<i64: 1, 128>}, {transform_indices = @transform_7, window_bounds = array<i64: 8, 4>}, {transform_indices = @transform_8, window_bounds = array<i64: 8, 1>}]} {
    %c0 = arith.constant 0 : index
    %c0_0 = arith.constant 0 : index
    %0 = vector.load %arg2[%c0, %c0_0] : memref<16x128xf32, #tpu.memory_space<vmem>>, vector<16x128xf32>
    %c0_1 = arith.constant 0 : index
    %c0_2 = arith.constant 0 : index
    %1 = vector.load %arg1[%c0_1, %c0_2] : memref<8x16xf32, #tpu.memory_space<vmem>>, vector<8x16xf32>
    %cst = arith.constant dense<0.000000e+00> : vector<8x128xf32>
    %2 = tpu.matmul %1, %0, %cst {dimension_numbers = #tpu.dot_dimension_numbers<[1], [0], [0], [1], [0, 0, 1, 1], [], []>} : vector<8x16xf32>, vector<16x128xf32>, vector<8x128xf32> -> vector<8x128xf32>
    %c0_3 = arith.constant 0 : index
    %c0_4 = arith.constant 0 : index
    %3 = vector.load %arg3[%c0_3, %c0_4] : memref<1x128xf32, #tpu.memory_space<vmem>>, vector<1x128xf32>
    %4 = vector.broadcast %3 : vector<1x128xf32> to vector<8x128xf32>
    %5 = arith.addf %2, %4 : vector<8x128xf32>
    %6 = math.tanh %5 : vector<8x128xf32>
    %c0_5 = arith.constant 0 : index
    %c0_6 = arith.constant 0 : index
    %7 = vector.load %arg4[%c0_5, %c0_6] : memref<128x128xf32, #tpu.memory_space<vmem>>, vector<128x128xf32>
    %cst_7 = arith.constant dense<0.000000e+00> : vector<8x128xf32>
    %8 = tpu.matmul %6, %7, %cst_7 {dimension_numbers = #tpu.dot_dimension_numbers<[1], [0], [0], [1], [0, 0, 1, 1], [], []>} : vector<8x128xf32>, vector<128x128xf32>, vector<8x128xf32> -> vector<8x128xf32>
    %c0_8 = arith.constant 0 : index
    %c0_9 = arith.constant 0 : index
    %9 = vector.load %arg5[%c0_8, %c0_9] : memref<1x128xf32, #tpu.memory_space<vmem>>, vector<1x128xf32>
    %10 = vector.broadcast %9 : vector<1x128xf32> to vector<8x128xf32>
    %11 = arith.addf %8, %10 : vector<8x128xf32>
    %12 = math.tanh %11 : vector<8x128xf32>
    %c0_10 = arith.constant 0 : index
    %c0_11 = arith.constant 0 : index
    %13 = vector.load %arg6[%c0_10, %c0_11] : memref<128x128xf32, #tpu.memory_space<vmem>>, vector<128x128xf32>
    %cst_12 = arith.constant dense<0.000000e+00> : vector<8x128xf32>
    %14 = tpu.matmul %12, %13, %cst_12 {dimension_numbers = #tpu.dot_dimension_numbers<[1], [0], [0], [1], [0, 0, 1, 1], [], []>} : vector<8x128xf32>, vector<128x128xf32>, vector<8x128xf32> -> vector<8x128xf32>
    %c0_13 = arith.constant 0 : index
    %c0_14 = arith.constant 0 : index
    %15 = vector.load %arg7[%c0_13, %c0_14] : memref<1x128xf32, #tpu.memory_space<vmem>>, vector<1x128xf32>
    %16 = vector.broadcast %15 : vector<1x128xf32> to vector<8x128xf32>
    %17 = arith.addf %14, %16 : vector<8x128xf32>
    %18 = vector.extract_strided_slice %17 {offsets = [0, 0], sizes = [8, 4], strides = [1, 1]} : vector<8x128xf32> to vector<8x4xf32>
    %c0_15 = arith.constant 0 : index
    %c0_16 = arith.constant 0 : index
    %19 = vector.load %arg8[%c0_15, %c0_16] : memref<8x4xf32, #tpu.memory_space<vmem>>, vector<8x4xf32>
    tpu.vector_store %arg8[%c0_15, %c0_16], %18 {strides = array<i32>} : memref<8x4xf32, #tpu.memory_space<vmem>>, vector<8x4xf32>,
    %20 = vector.extract_strided_slice %17 {offsets = [0, 4], sizes = [8, 1], strides = [1, 1]} : vector<8x128xf32> to vector<8x1xf32>
    %c0_17 = arith.constant 0 : index
    %c0_18 = arith.constant 0 : index
    %21 = vector.load %arg9[%c0_17, %c0_18] : memref<8x1xf32, #tpu.memory_space<vmem>>, vector<8x1xf32>
    tpu.vector_store %arg9[%c0_17, %c0_18], %20 {strides = array<i32>} : memref<8x1xf32, #tpu.memory_space<vmem>>, vector<8x1xf32>,
    return
  }
  func.func @transform_0(%arg0: i32) -> (i32, i32) {
    %c0_i32 = arith.constant 0 : i32
    %c0_i32_0 = arith.constant 0 : i32
    return %arg0, %c0_i32 : i32, i32
  }
  func.func @transform_1(%arg0: i32) -> (i32, i32) {
    %c0_i32 = arith.constant 0 : i32
    %c0_i32_0 = arith.constant 0 : i32
    %c0_i32_1 = arith.constant 0 : i32
    return %c0_i32, %c0_i32_0 : i32, i32
  }
  func.func @transform_2(%arg0: i32) -> (i32, i32) {
    %c0_i32 = arith.constant 0 : i32
    %c0_i32_0 = arith.constant 0 : i32
    %c0_i32_1 = arith.constant 0 : i32
    return %c0_i32, %c0_i32_0 : i32, i32
  }
  func.func @transform_3(%arg0: i32) -> (i32, i32) {
    %c0_i32 = arith.constant 0 : i32
    %c0_i32_0 = arith.constant 0 : i32
    %c0_i32_1 = arith.constant 0 : i32
    return %c0_i32, %c0_i32_0 : i32, i32
  }
  func.func @transform_4(%arg0: i32) -> (i32, i32) {
    %c0_i32 = arith.constant 0 : i32
    %c0_i32_0 = arith.constant 0 : i32
    %c0_i32_1 = arith.constant 0 : i32
    return %c0_i32, %c0_i32_0 : i32, i32
  }
  func.func @transform_5(%arg0: i32) -> (i32, i32) {
    %c0_i32 = arith.constant 0 : i32
    %c0_i32_0 = arith.constant 0 : i32
    %c0_i32_1 = arith.constant 0 : i32
    return %c0_i32, %c0_i32_0 : i32, i32
  }
  func.func @transform_6(%arg0: i32) -> (i32, i32) {
    %c0_i32 = arith.constant 0 : i32
    %c0_i32_0 = arith.constant 0 : i32
    %c0_i32_1 = arith.constant 0 : i32
    return %c0_i32, %c0_i32_0 : i32, i32
  }
  func.func @transform_7(%arg0: i32) -> (i32, i32) {
    %c0_i32 = arith.constant 0 : i32
    %c0_i32_0 = arith.constant 0 : i32
    return %arg0, %c0_i32 : i32, i32
  }
  func.func @transform_8(%arg0: i32) -> (i32, i32) {
    %c0_i32 = arith.constant 0 : i32
    %c0_i32_0 = arith.constant 0 : i32
    return %arg0, %c0_i32 : i32, i32
  }
}

</mosaic_0001>

<llo_original>
// kernel: tpu_custom_call.1
$region0: #{tpu_custom_call.1}
  #allocation0 [shape = 'u32[]', space=smem, size = 0x4, offset = 0x4, fixed_abs, tag = 'smem constant byte address 0x4 - core index']
  #allocation1 [shape = 'u32[144,128]{1,0:T(1,128)}', space=vmem, size = 0x12000, scoped, tag = 'internal scratch']
  %s0 = inlined_call_operand.hbm [shape: f32[8,16], index: 0, kind: input, shape index: {}]
  %s1 = inlined_call_operand.hbm [shape: f32[16,128], index: 1, kind: input, shape index: {}]
  %s2 = inlined_call_operand.vmem [shape: f32[1,128], index: 2, kind: input, shape index: {}]
  %s3 = inlined_call_operand.hbm [shape: f32[128,128], index: 3, kind: input, shape index: {}]
  %s4 = inlined_call_operand.vmem [shape: f32[1,128], index: 4, kind: input, shape index: {}]
  %s5 = inlined_call_operand.hbm [shape: f32[128,128], index: 5, kind: input, shape index: {}]
  %s6 = inlined_call_operand.vmem [shape: f32[1,128], index: 6, kind: input, shape index: {}]
  %s7 = inlined_call_operand.vmem [shape: f32[8,4], index: 7, kind: output, shape index: {0}]
  %s8 = inlined_call_operand.vmem [shape: f32[8,1], index: 8, kind: output, shape index: {1}]
  %9 = xla_tuple %s7, %s8
  %s10 = sld [smem:[#allocation0]]
  $region62: #{tpu_custom_call.1} parent=0
    _
  %s12 = ssub.s32 1, %s10
  %s13 = scalar_select 0, %s12, %s10
  $region1: #{tpu_custom_call.1} parent=0
    #allocation2 [shape = 'u8[4096]{0}', space=vmem, size = 0x1000, scoped, tag = 'input window, operand 0, single buffered']
    #allocation3 [shape = 's32[1]{0}', space=sflag, size = 0x4, scoped, tag = 'scoped memory for tpu_custom_call.1']
    #allocation4 [shape = 'u8[8192]{0}', space=vmem, size = 0x2000, scoped, tag = 'input window, operand 1, single buffered']
    #allocation5 [shape = 's32[1]{0}', space=sflag, size = 0x4, scoped, tag = 'scoped memory for tpu_custom_call.1']
    #allocation6 [shape = 'u8[65536]{0}', space=vmem, size = 0x10000, scoped, tag = 'input window, operand 3, single buffered']
    #allocation7 [shape = 'u8[65536]{0}', space=vmem, size = 0x10000, scoped, tag = 'input window, operand 5, single buffered']
    #allocation8 [shape = 's32[1]{0}', space=sflag, size = 0x4, scoped, tag = 'scoped memory for tpu_custom_call.1']
    %14 = vsyncpa [#allocation3], 0
    %15 = vsyncpa [#allocation5], 0
    %16 = vsyncpa [#allocation8], 0
    // Predicated region
    $region2: #{tpu_custom_call.1} parent=1 // pred_check
      _
    $region3: #{tpu_custom_call.1} parent=1 // pred_check_branch
      %18 = sbr.rel (0) target = $region5
    $region4: #{tpu_custom_call.1} parent=1 // pred_region
      %s20 = ssub.s32 128, 128
      %21 = vsyncadd [#allocation3], %s20
      %s23 = sshll.u32 [#allocation2], 4
      %s24 = int_to_ptr.vmem [resolvable:$true] %s23
      %26 = dma.hbm_to_vmem [thread:$0]  %s0, 128, %s24, [#allocation3]
    $region5: #{tpu_custom_call.1} parent=1 // pred_fallthru
      _
    // Predicated region
    $region6: #{tpu_custom_call.1} parent=1 // pred_check
      _
    $region7: #{tpu_custom_call.1} parent=1 // pred_check_branch
      %28 = sbr.rel (0) target = $region9
    $region8: #{tpu_custom_call.1} parent=1 // pred_region
      %s30 = ssub.s32 256, 256
      %31 = vsyncadd [#allocation5], %s30
      %s32 = sshll.u32 [#allocation4], 4
      %s33 = int_to_ptr.vmem [resolvable:$true] %s32
      %38 = dma.hbm_to_vmem [thread:$0]  %s1, 256, %s33, [#allocation5], 128, 128, 8
    $region9: #{tpu_custom_call.1} parent=1 // pred_fallthru
      _
    // Predicated region
    $region10: #{tpu_custom_call.1} parent=1 // pred_check
      _
    $region11: #{tpu_custom_call.1} parent=1 // pred_check_branch
      %40 = sbr.rel (0) target = $region13
    $region12: #{tpu_custom_call.1} parent=1 // pred_region
      _
    $region13: #{tpu_custom_call.1} parent=1 // pred_fallthru
      _
    // Predicated region
    $region14: #{tpu_custom_call.1} parent=1 // pred_check
      _
    $region15: #{tpu_custom_call.1} parent=1 // pred_check_branch
      %42 = sbr.rel (0) target = $region17
    $region16: #{tpu_custom_call.1} parent=1 // pred_region
      %s44 = ssub.s32 2048, 2048
      %45 = vsyncadd [#allocation5], %s44
      %s46 = sshll.u32 [#allocation6], 4
      %s47 = int_to_ptr.vmem [resolvable:$true] %s46
      %52 = dma.hbm_to_vmem [thread:$0]  %s3, 2048, %s47, [#allocation5], 128, 128, 8
    $region17: #{tpu_custom_call.1} parent=1 // pred_fallthru
      _
    // Predicated region
    $region18: #{tpu_custom_call.1} parent=1 // pred_check
      _
    $region19: #{tpu_custom_call.1} parent=1 // pred_check_branch
      %54 = sbr.rel (0) target = $region21
    $region20: #{tpu_custom_call.1} parent=1 // pred_region
      _
    $region21: #{tpu_custom_call.1} parent=1 // pred_fallthru
      _
    // Predicated region
    $region22: #{tpu_custom_call.1} parent=1 // pred_check
      _
    $region23: #{tpu_custom_call.1} parent=1 // pred_check_branch
      %56 = sbr.rel (0) target = $region25
    $region24: #{tpu_custom_call.1} parent=1 // pred_region
      %s58 = ssub.s32 2048, 2048
      %59 = vsyncadd [#allocation8], %s58
      %s60 = sshll.u32 [#allocation7], 4
      %s61 = int_to_ptr.vmem [resolvable:$true] %s60
      %66 = dma.hbm_to_vmem [thread:$0]  %s5, 2048, %s61, [#allocation8], 128, 128, 8
    $region25: #{tpu_custom_call.1} parent=1 // pred_fallthru
      _
    // Predicated region
    $region26: #{tpu_custom_call.1} parent=1 // pred_check
      _
    $region27: #{tpu_custom_call.1} parent=1 // pred_check_branch
      %68 = sbr.rel (0) target = $region29
    $region28: #{tpu_custom_call.1} parent=1 // pred_region
      _
    $region29: #{tpu_custom_call.1} parent=1 // pred_fallthru
      _
    // Predicated region
    $region30: #{tpu_custom_call.1} parent=1 // pred_check
      _
    $region31: #{tpu_custom_call.1} parent=1 // pred_check_branch
      %70 = sbr.rel (0) target = $region33
    $region32: #{tpu_custom_call.1} parent=1 // pred_region
      %71 = dma.done [#allocation3], 128
    $region33: #{tpu_custom_call.1} parent=1 // pred_fallthru
      _
    // Predicated region
    $region34: #{tpu_custom_call.1} parent=1 // pred_check
      _
    $region35: #{tpu_custom_call.1} parent=1 // pred_check_branch
      %73 = sbr.rel (0) target = $region37
    $region36: #{tpu_custom_call.1} parent=1 // pred_region
      %74 = dma.done [#allocation5], 256
    $region37: #{tpu_custom_call.1} parent=1 // pred_fallthru
      _
    // Predicated region
    $region38: #{tpu_custom_call.1} parent=1 // pred_check
      _
    $region39: #{tpu_custom_call.1} parent=1 // pred_check_branch
      %76 = sbr.rel (0) target = $region41
    $region40: #{tpu_custom_call.1} parent=1 // pred_region
      %77 = dma.done [#allocation5], 2048
    $region41: #{tpu_custom_call.1} parent=1 // pred_fallthru
      _
    // Predicated region
    $region42: #{tpu_custom_call.1} parent=1 // pred_check
      _
    $region43: #{tpu_custom_call.1} parent=1 // pred_check_branch
      %79 = sbr.rel (0) target = $region45
    $region44: #{tpu_custom_call.1} parent=1 // pred_region
      %80 = dma.done [#allocation8], 2048
    $region45: #{tpu_custom_call.1} parent=1 // pred_fallthru
      _
    %v81 = vld [vmem:[#allocation4] sm:$0xff]
    %v82 = vld [vmem:[#allocation4 + $0x8] sm:$0xff]
    %v83 = vld [vmem:[#allocation2] sm:$0xff]
    %v84 = vld [vmem:[%s2] sm:$0x1]
    %v86 = vlaneseq
    %v87 = vshrl.u32 %v86, 7
    %v88 = vsub.s32 0, %v87
    %v89 = vrot.slane %v84, %v88
    %vm91 = vcmask 130048
    %v93 = vsel %vm91, %v83, 0
    %95 = vmatprep.subr.mxu0 0.0
    %96 = vmatpush1.msra.mxu0 %v81
    %97 = vmatprep.subr.mxu0 0.0
    %98 = vmatpush1.msra.mxu0 %v82
    %99 = vmatprep.subr.mxu0 0.0
    %100 = vmatpush1.msra.mxu0 0.0
    %101 = vmatprep.subr.mxu0 0.0
    %102 = vmatpush1.msra.mxu0 0.0
    %103 = vmatprep.subr.mxu0 0.0
    %104 = vmatpush1.msra.mxu0 0.0
    %105 = vmatprep.subr.mxu0 0.0
    %106 = vmatpush1.msra.mxu0 0.0
    %107 = vmatprep.subr.mxu0 0.0
    %108 = vmatpush1.msra.mxu0 0.0
    %109 = vmatprep.subr.mxu0 0.0
    %110 = vmatpush1.msra.mxu0 0.0
    %111 = vmatprep.subr.mxu0 0.0
    %112 = vmatpush1.msra.mxu0 0.0
    %113 = vmatprep.subr.mxu0 0.0
    %114 = vmatpush1.msra.mxu0 0.0
    %115 = vmatprep.subr.mxu0 0.0
    %116 = vmatpush1.msra.mxu0 0.0
    %117 = vmatprep.subr.mxu0 0.0
    %118 = vmatpush1.msra.mxu0 0.0
    %119 = vmatprep.subr.mxu0 0.0
    %120 = vmatpush1.msra.mxu0 0.0
    %121 = vmatprep.subr.mxu0 0.0
    %122 = vmatpush1.msra.mxu0 0.0
    %123 = vmatprep.subr.mxu0 0.0
    %124 = vmatpush1.msra.mxu0 0.0
    %125 = vmatprep.subr.mxu0 0.0
    %126 = vmatpush1.msra.mxu0 0.0
    %127 = vmatprep.subr.mxu0 0.0
    %128 = vmatpush1.msra.mxu0 0.0
    %129 = vmatprep.subr.mxu0 0.0
    %130 = vmatpush1.msra.mxu0 0.0
    %131 = vmatprep.subr.mxu0 0.0
    %132 = vmatpush1.msra.mxu0 0.0
    %133 = vmatprep.subr.mxu0 0.0
    %134 = vmatpush1.msra.mxu0 0.0
    %135 = vmatprep.subr.mxu0 0.0
    %136 = vmatpush1.msra.mxu0 0.0
    %137 = vmatprep.subr.mxu0 0.0
    %138 = vmatpush1.msra.mxu0 0.0
    %139 = vmatprep.subr.mxu0 0.0
    %140 = vmatpush1.msra.mxu0 0.0
    %141 = vmatprep.subr.mxu0 0.0
    %142 = vmatpush1.msra.mxu0 0.0
    %143 = vmatprep.subr.mxu0 0.0
    %144 = vmatpush1.msra.mxu0 0.0
    %145 = vmatprep.subr.mxu0 0.0
    %146 = vmatpush1.msra.mxu0 0.0
    %147 = vmatprep.subr.mxu0 0.0
    %148 = vmatpush1.msra.mxu0 0.0
    %149 = vmatprep.subr.mxu0 0.0
    %150 = vmatpush1.msra.mxu0 0.0
    %151 = vmatprep.subr.mxu0 0.0
    %152 = vmatpush1.msra.mxu0 0.0
    %153 = vmatprep.subr.mxu0 0.0
    %154 = vmatpush1.msra.mxu0 0.0
    %155 = vmatprep.subr.mxu0 0.0
    %156 = vmatpush1.msra.mxu0 0.0
    %157 = vmatprep.subr.mxu0 0.0
    %158 = vmatpush1.msra.mxu0 0.0
    %159 = vmatprep.mubr.f32.mxu0 0.0
    %160 = vmatmul.mubr.f32.gmra.mrb[0].mxu0 %v93
    %v161 = vpop.f32.mrb[0].mxu0
    %v162 = vadd.f32 %v89, %v161
    %v163 = vpop.f32.mrb[0].mxu0
    %164 = vdwg.mxu0
    %v165 = vtanh.pop %v162
    %v166 = vld [vmem:[#allocation6] sm:$0xff]
    %v167 = vld [vmem:[#allocation6 + $0x8] sm:$0xff]
    %v168 = vld [vmem:[#allocation6 + $0x10] sm:$0xff]
    %v169 = vld [vmem:[#allocation6 + $0x18] sm:$0xff]
    %v170 = vld [vmem:[#allocation6 + $0x20] sm:$0xff]
    %v171 = vld [vmem:[#allocation6 + $0x28] sm:$0xff]
    %v172 = vld [vmem:[#allocation6 + $0x30] sm:$0xff]
    %v173 = vld [vmem:[#allocation6 + $0x38] sm:$0xff]
    %v174 = vld [vmem:[#allocation6 + $0x40] sm:$0xff]
    %v175 = vld [vmem:[#allocation6 + $0x48] sm:$0xff]
    %v176 = vld [vmem:[#allocation6 + $0x50] sm:$0xff]
    %v177 = vld [vmem:[#allocation6 + $0x58] sm:$0xff]
    %v178 = vld [vmem:[#allocation6 + $0x60] sm:$0xff]
    %v179 = vld [vmem:[#allocation6 + $0x68] sm:$0xff]
    %v180 = vld [vmem:[#allocation6 + $0x70] sm:$0xff]
    %v181 = vld [vmem:[#allocation6 + $0x78] sm:$0xff]
    %v182 = vld [vmem:[%s4] sm:$0x1]
    %v184 = vlaneseq
    %v185 = vshrl.u32 %v184, 7
    %v186 = vsub.s32 0, %v185
    %v187 = vrot.slane %v182, %v186
    %189 = vmatprep.subr.mxu0 0.0
    %190 = vmatpush1.msra.mxu0 %v166
    %191 = vmatprep.subr.mxu0 0.0
    %192 = vmatpush1.msra.mxu0 %v167
    %193 = vmatprep.subr.mxu0 0.0
    %194 = vmatpush1.msra.mxu0 %v168
    %195 = vmatprep.subr.mxu0 0.0
    %196 = vmatpush1.msra.mxu0 %v169
    %197 = vmatprep.subr.mxu0 0.0
    %198 = vmatpush1.msra.mxu0 %v170
    %199 = vmatprep.subr.mxu0 0.0
    %200 = vmatpush1.msra.mxu0 %v171
    %201 = vmatprep.subr.mxu0 0.0
    %202 = vmatpush1.msra.mxu0 %v172
    %203 = vmatprep.subr.mxu0 0.0
    %204 = vmatpush1.msra.mxu0 %v173
    %205 = vmatprep.subr.mxu0 0.0
    %206 = vmatpush1.msra.mxu0 %v174
    %207 = vmatprep.subr.mxu0 0.0
    %208 = vmatpush1.msra.mxu0 %v175
    %209 = vmatprep.subr.mxu0 0.0
    %210 = vmatpush1.msra.mxu0 %v176
    %211 = vmatprep.subr.mxu0 0.0
    %212 = vmatpush1.msra.mxu0 %v177
    %213 = vmatprep.subr.mxu0 0.0
    %214 = vmatpush1.msra.mxu0 %v178
    %215 = vmatprep.subr.mxu0 0.0
    %216 = vmatpush1.msra.mxu0 %v179
    %217 = vmatprep.subr.mxu0 0.0
    %218 = vmatpush1.msra.mxu0 %v180
    %219 = vmatprep.subr.mxu0 0.0
    %220 = vmatpush1.msra.mxu0 %v181
    %221 = vmatprep.subr.mxu0 0.0
    %222 = vmatpush1.msra.mxu0 0.0
    %223 = vmatprep.subr.mxu0 0.0
    %224 = vmatpush1.msra.mxu0 0.0
    %225 = vmatprep.subr.mxu0 0.0
    %226 = vmatpush1.msra.mxu0 0.0
    %227 = vmatprep.subr.mxu0 0.0
    %228 = vmatpush1.msra.mxu0 0.0
    %229 = vmatprep.subr.mxu0 0.0
    %230 = vmatpush1.msra.mxu0 0.0
    %231 = vmatprep.subr.mxu0 0.0
    %232 = vmatpush1.msra.mxu0 0.0
    %233 = vmatprep.subr.mxu0 0.0
    %234 = vmatpush1.msra.mxu0 0.0
    %235 = vmatprep.subr.mxu0 0.0
    %236 = vmatpush1.msra.mxu0 0.0
    %237 = vmatprep.subr.mxu0 0.0
    %238 = vmatpush1.msra.mxu0 0.0
    %239 = vmatprep.subr.mxu0 0.0
    %240 = vmatpush1.msra.mxu0 0.0
    %241 = vmatprep.subr.mxu0 0.0
    %242 = vmatpush1.msra.mxu0 0.0
    %243 = vmatprep.subr.mxu0 0.0
    %244 = vmatpush1.msra.mxu0 0.0
    %245 = vmatprep.subr.mxu0 0.0
    %246 = vmatpush1.msra.mxu0 0.0
    %247 = vmatprep.subr.mxu0 0.0
    %248 = vmatpush1.msra.mxu0 0.0
    %249 = vmatprep.subr.mxu0 0.0
    %250 = vmatpush1.msra.mxu0 0.0
    %251 = vmatprep.subr.mxu0 0.0
    %252 = vmatpush1.msra.mxu0 0.0
    %253 = vmatprep.mubr.f32.mxu0 0.0
    %254 = vmatmul.mubr.f32.gmra.mrb[0].mxu0 %v165
    %v255 = vpop.f32.mrb[0].mxu0
    %v256 = vadd.f32 %v187, %v255
    %v257 = vpop.f32.mrb[0].mxu0
    %258 = vdwg.mxu0
    %v259 = vtanh.pop %v256
    %v260 = vld [vmem:[#allocation7] sm:$0xff]
    %v261 = vld [vmem:[#allocation7 + $0x8] sm:$0xff]
    %v262 = vld [vmem:[#allocation7 + $0x10] sm:$0xff]
    %v263 = vld [vmem:[#allocation7 + $0x18] sm:$0xff]
    %v264 = vld [vmem:[#allocation7 + $0x20] sm:$0xff]
    %v265 = vld [vmem:[#allocation7 + $0x28] sm:$0xff]
    %v266 = vld [vmem:[#allocation7 + $0x30] sm:$0xff]
    %v267 = vld [vmem:[#allocation7 + $0x38] sm:$0xff]
    %v268 = vld [vmem:[#allocation7 + $0x40] sm:$0xff]
    %v269 = vld [vmem:[#allocation7 + $0x48] sm:$0xff]
    %v270 = vld [vmem:[#allocation7 + $0x50] sm:$0xff]
    %v271 = vld [vmem:[#allocation7 + $0x58] sm:$0xff]
    %v272 = vld [vmem:[#allocation7 + $0x60] sm:$0xff]
    %v273 = vld [vmem:[#allocation7 + $0x68] sm:$0xff]
    %v274 = vld [vmem:[#allocation7 + $0x70] sm:$0xff]
    %v275 = vld [vmem:[#allocation7 + $0x78] sm:$0xff]
    %v276 = vld [vmem:[%s6] sm:$0x1]
    %v278 = vlaneseq
    %v279 = vshrl.u32 %v278, 7
    %v280 = vsub.s32 0, %v279
    %v281 = vrot.slane %v276, %v280
    %283 = vmatprep.subr.mxu0 0.0
    %284 = vmatpush1.msra.mxu0 %v260
    %285 = vmatprep.subr.mxu0 0.0
    %286 = vmatpush1.msra.mxu0 %v261
    %287 = vmatprep.subr.mxu0 0.0
    %288 = vmatpush1.msra.mxu0 %v262
    %289 = vmatprep.subr.mxu0 0.0
    %290 = vmatpush1.msra.mxu0 %v263
    %291 = vmatprep.subr.mxu0 0.0
    %292 = vmatpush1.msra.mxu0 %v264
    %293 = vmatprep.subr.mxu0 0.0
    %294 = vmatpush1.msra.mxu0 %v265
    %295 = vmatprep.subr.mxu0 0.0
    %296 = vmatpush1.msra.mxu0 %v266
    %297 = vmatprep.subr.mxu0 0.0
    %298 = vmatpush1.msra.mxu0 %v267
    %299 = vmatprep.subr.mxu0 0.0
    %300 = vmatpush1.msra.mxu0 %v268
    %301 = vmatprep.subr.mxu0 0.0
    %302 = vmatpush1.msra.mxu0 %v269
    %303 = vmatprep.subr.mxu0 0.0
    %304 = vmatpush1.msra.mxu0 %v270
    %305 = vmatprep.subr.mxu0 0.0
    %306 = vmatpush1.msra.mxu0 %v271
    %307 = vmatprep.subr.mxu0 0.0
    %308 = vmatpush1.msra.mxu0 %v272
    %309 = vmatprep.subr.mxu0 0.0
    %310 = vmatpush1.msra.mxu0 %v273
    %311 = vmatprep.subr.mxu0 0.0
    %312 = vmatpush1.msra.mxu0 %v274
    %313 = vmatprep.subr.mxu0 0.0
    %314 = vmatpush1.msra.mxu0 %v275
    %315 = vmatprep.subr.mxu0 0.0
    %316 = vmatpush1.msra.mxu0 0.0
    %317 = vmatprep.subr.mxu0 0.0
    %318 = vmatpush1.msra.mxu0 0.0
    %319 = vmatprep.subr.mxu0 0.0
    %320 = vmatpush1.msra.mxu0 0.0
    %321 = vmatprep.subr.mxu0 0.0
    %322 = vmatpush1.msra.mxu0 0.0
    %323 = vmatprep.subr.mxu0 0.0
    %324 = vmatpush1.msra.mxu0 0.0
    %325 = vmatprep.subr.mxu0 0.0
    %326 = vmatpush1.msra.mxu0 0.0
    %327 = vmatprep.subr.mxu0 0.0
    %328 = vmatpush1.msra.mxu0 0.0
    %329 = vmatprep.subr.mxu0 0.0
    %330 = vmatpush1.msra.mxu0 0.0
    %331 = vmatprep.subr.mxu0 0.0
    %332 = vmatpush1.msra.mxu0 0.0
    %333 = vmatprep.subr.mxu0 0.0
    %334 = vmatpush1.msra.mxu0 0.0
    %335 = vmatprep.subr.mxu0 0.0
    %336 = vmatpush1.msra.mxu0 0.0
    %337 = vmatprep.subr.mxu0 0.0
    %338 = vmatpush1.msra.mxu0 0.0
    %339 = vmatprep.subr.mxu0 0.0
    %340 = vmatpush1.msra.mxu0 0.0
    %341 = vmatprep.subr.mxu0 0.0
    %342 = vmatpush1.msra.mxu0 0.0
    %343 = vmatprep.subr.mxu0 0.0
    %344 = vmatpush1.msra.mxu0 0.0
    %345 = vmatprep.subr.mxu0 0.0
    %346 = vmatpush1.msra.mxu0 0.0
    %347 = vmatprep.mubr.f32.mxu0 0.0
    %348 = vmatmul.mubr.f32.gmra.mrb[0].mxu0 %v259
    %v349 = vpop.f32.mrb[0].mxu0
    %v350 = vadd.f32 %v281, %v349
    %v351 = vpop.f32.mrb[0].mxu0
    %352 = vdwg.mxu0
    %vm353 = vcmask 31744
    %354 = vst.msk [vmem:[%s7] sm:$0xff] %vm353, %v350
    %356 = vrot.lane.b32.xlu0 %v350, 124
    %v357 = vpop.permute.xlu0 %356
    %vm359 = vcmask 7168
    %360 = vst.msk [vmem:[%s8] sm:$0xff] %vm359, %v357
    // Predicated region
    $region46: #{tpu_custom_call.1} parent=1 // pred_check
      _
    $region47: #{tpu_custom_call.1} parent=1 // pred_check_branch
      %362 = sbr.rel (0) target = $region49
    $region48: #{tpu_custom_call.1} parent=1 // pred_region
      _
    $region49: #{tpu_custom_call.1} parent=1 // pred_fallthru
      _
    // Predicated region
    $region50: #{tpu_custom_call.1} parent=1 // pred_check
      _
    $region51: #{tpu_custom_call.1} parent=1 // pred_check_branch
      %364 = sbr.rel (0) target = $region53
    $region52: #{tpu_custom_call.1} parent=1 // pred_region
      _
    $region53: #{tpu_custom_call.1} parent=1 // pred_fallthru
      _
    // Predicated region
    $region54: #{tpu_custom_call.1} parent=1 // pred_check
      _
    $region55: #{tpu_custom_call.1} parent=1 // pred_check_branch
      %366 = sbr.rel (0) target = $region57
    $region56: #{tpu_custom_call.1} parent=1 // pred_region
      _
    $region57: #{tpu_custom_call.1} parent=1 // pred_fallthru
      _
    // Predicated region
    $region58: #{tpu_custom_call.1} parent=1 // pred_check
      _
    $region59: #{tpu_custom_call.1} parent=1 // pred_check_branch
      %368 = sbr.rel (0) target = $region61
    $region60: #{tpu_custom_call.1} parent=1 // pred_region
      _
    $region61: #{tpu_custom_call.1} parent=1 // pred_fallthru
      _
    %369 = vsyncpa [#allocation3], 1
    %370 = vsyncpa [#allocation5], 1
    %371 = vsyncpa [#allocation8], 1

</llo_original>
